<compile_context>
chip_gen: v7x
topology: tpu7x:2x2x1
jax: 0.10.0
libtpu: 0.0.40
codegen_flags: <defaults>
</compile_context>

<pallas_src>
import time

import jax
import jax.numpy as jnp
from jax.experimental import pallas as pl
from jax.experimental.pallas import tpu as pltpu


# ---------------- model / problem sizes (small, synthetic) ----------------
B = 2          # batch
V = 3          # number of views
C = 4          # input channels per view
H = W = 16     # spatial
HW = H * W
CMID = 32      # hidden channels after per-view conv
COUT = 8       # output channels of the head


# ------------------------------ Pallas kernel ------------------------------
def _multiview_kernel(x_ref, w1_ref, w2_ref, b2_ref, o_ref):
    """Single invocation (no grid); whole problem lives in VMEM.

    x_ref  : (B*V*C + 1, HW)  bf16  rows ordered (b, v, c); last row = ones
    w1_ref : (B*V*CMID, B*V*C + 1) bf16  kron(I_{B*V}, w1^T) ++ b1 column
    w2_ref : (B*COUT, B*V*CMID)    bf16  kron(I_B, tile(w2^T / V, V))
    b2_ref : (B*COUT, 1)           f32   head bias
    o_ref  : (B*COUT, HW)          f32   rows ordered (b, cout); lane-dense
    """
    # Layer 1: all B*V per-view 1x1 convs + bias in ONE MXU call
    # (bias folded into K via the ones row of x).
    h = jnp.dot(w1_ref[...], x_ref[...], preferred_element_type=jnp.float32)
    h = jnp.maximum(h, 0.0)                       # only VPU op on h (f32)
    # Head: mean-over-views AND the 1x1 head conv folded into ONE MXU call
    # (W2 repeats w2^T/V across the view blocks, so the K reduction does the
    # view averaging inside the MXU with f32 accumulation).
    out = jnp.dot(w2_ref[...], h.astype(jnp.bfloat16),
                  preferred_element_type=jnp.float32)
    # b2 broadcasts along lanes; single lane-dense (16, 256) store.
    o_ref[...] = out + b2_ref[...]


def multiview_model_pallas(x_big, w1_big, w2_big, b2_big):
    """x_big: [B*V*C+1, HW] bf16 -> pred [B*COUT, HW] f32 (single grid step)."""
    vmem = pl.BlockSpec(memory_space=pltpu.MemorySpace.VMEM)
    flops = 2 * (B * V * CMID) * (B * V * C + 1) * HW \
        + 2 * (B * COUT) * (B * V * CMID) * HW
    bytes_accessed = (
        (B * V * C + 1) * HW * 2                       # x (bf16)
        + (B * V * CMID) * (B * V * C + 1) * 2         # w1 (bf16)
        + (B * COUT) * (B * V * CMID) * 2              # w2 (bf16)
        + (B * COUT) * 4                               # b2 (f32)
        + (B * COUT) * HW * 4                          # out (f32)
    )
    return pl.pallas_call(
        _multiview_kernel,
        out_shape=jax.ShapeDtypeStruct((B * COUT, HW), jnp.float32),
        in_specs=[vmem, vmem, vmem, vmem],
        out_specs=vmem,
        cost_estimate=pl.CostEstimate(flops=flops, transcendentals=0,
                                      bytes_accessed=bytes_accessed),
    )(x_big, w1_big, w2_big, b2_big)


# ------------------------- pipeline wrapper (glue) -------------------------
class MultiViewPipelinePallas:
    """Mirrors MultiViewPipeline.forward: run model, time it, wrap in a dict."""

    def __init__(self, params):
        self._forward = None
        if params is not None:
            w1, b1, w2, b2 = params
            w1 = jnp.asarray(w1, jnp.float32)
            b1 = jnp.asarray(b1, jnp.float32)
            w2 = jnp.asarray(w2, jnp.float32)
            b2 = jnp.asarray(b2, jnp.float32)

            # --- one-time constant re-layout (not per-call work) ---
            # Layer 1: block-diagonal over (batch, view) with the bias folded
            # in as an extra K column (driven by a ones-row appended to x).
            w1t = w1.T                                              # (CMID, C)
            w1_main = jnp.kron(jnp.eye(B * V, dtype=jnp.float32), w1t)
            bias_col = jnp.tile(b1.reshape(CMID, 1), (B * V, 1))    # (B*V*CMID, 1)
            w1_big = jnp.concatenate([w1_main, bias_col], axis=1)   # (192, 25)

            # Head: 1/V mean over views folded into the weight, and the view
            # reduction folded into the K axis by tiling w2^T/V across views.
            w2t_scaled = w2.T / V                                   # (COUT, CMID)
            w2_big = jnp.kron(jnp.eye(B, dtype=jnp.float32),
                              jnp.tile(w2t_scaled, (1, V)))         # (16, 192)
            b2_big = jnp.tile(b2.reshape(COUT, 1), (B, 1))          # (16, 1)

            # bf16 MXU operands (f32 accumulation inside the kernel).
            self._w1_big = w1_big.astype(jnp.bfloat16)
            self._w2_big = w2_big.astype(jnp.bfloat16)
            self._b2_big = b2_big                                   # keep f32
            self._forward = jax.jit(self._forward_impl)

    def _forward_impl(self, x):
        # [B, V, C, H, W] -> [B*V*C, HW]  (pure contiguous reshape, no transpose)
        x_rows = x.reshape(B * V * C, HW).astype(jnp.bfloat16)
        ones_row = jnp.ones((1, HW), jnp.bfloat16)                  # bias driver
        x_big = jnp.concatenate([x_rows, ones_row], axis=0)         # (25, 256)
        pred = multiview_model_pallas(x_big, self._w1_big,
                                      self._w2_big, self._b2_big)
        # [B*COUT, HW] -> [B, COUT, H, W]  (pure reshape; already NCHW order)
        return pred.reshape(B, COUT, H, W)

    def __call__(self, input_data):
        time_stat = dict()
        end = time.time()
        pred = None
        if self._forward is not None:
            pred = self._forward(input_data)
            jax.block_until_ready(pred)      # single final sync for host timing
        time_stat['flow_time'] = time.time() - end
        # TODO(synk): PinnableDict (pinned-memory container) has no Pallas/JAX
        # equivalent; a plain dict preserves the forward-pass semantics.
        return {'pred': pred, 'time_stats': time_stat}


# ------------------------------ reference path ------------------------------
def _reference(x, w1, b1, w2, b2):
    x_bvrc = jnp.transpose(x, (0, 1, 3, 4, 2)).reshape(B, V, HW, C)
    h = jnp.maximum(jnp.einsum('bvrc,cm->bvrm', x_bvrc, w1) + b1, 0.0)
    fused = h.mean(axis=1)
    out = jnp.einsum('brm,mo->bro', fused, w2) + b2
    return jnp.transpose(out.reshape(B, H, W, COUT), (0, 3, 1, 2))


if __name__ == "__main__":
    key = jax.random.PRNGKey(0)
    kx, k1, k2, k3, k4 = jax.random.split(key, 5)

    # deterministic synthetic parameters (shapes implied by the 1x1-conv model)
    w1 = jax.random.normal(k1, (C, CMID), jnp.float32) * 0.1
    b1 = jax.random.normal(k2, (1, CMID), jnp.float32) * 0.1
    w2 = jax.random.normal(k3, (CMID, COUT), jnp.float32) * 0.1
    b2 = jax.random.normal(k4, (1, COUT), jnp.float32) * 0.1

    # deterministic example input: [B, V, C, H, W]  (NCHW per view)
    x = jax.random.normal(kx, (B, V, C, H, W), jnp.float32)

    pipeline = MultiViewPipelinePallas((w1, b1, w2, b2))
    out = pipeline(x)
    pred = jax.block_until_ready(out['pred'])

    ref = _reference(x, w1, b1, w2, b2)
    assert pred.shape == (B, COUT, H, W), pred.shape
    # bf16 MXU operands (f32 accumulation) -> loosened tolerance vs f32 ref.
    max_err = float(jnp.max(jnp.abs(pred - ref)))
    assert jnp.allclose(pred, ref, atol=2e-2, rtol=2e-2), max_err
    assert 'flow_time' in out['time_stats']

    print("KERNEL_OK")
</pallas_src>

<mosaic_0001>
module attributes {stable_mosaic.version = 11 : i64} {
  func.func @_multiview_kernel(%arg0: memref<25x256xbf16, #tpu.memory_space<vmem>>, %arg1: memref<192x25xbf16, #tpu.memory_space<vmem>>, %arg2: memref<16x192xbf16, #tpu.memory_space<vmem>>, %arg3: memref<16x1xf32, #tpu.memory_space<vmem>>, %arg4: memref<16x256xf32, #tpu.memory_space<vmem>>) attributes {dimension_semantics = [], scalar_prefetch = 0 : i64, scratch_operands = 0 : i64, tpu.core_type = #tpu.core_type<tc>} {
    %c0 = arith.constant 0 : index
    %c0_0 = arith.constant 0 : index
    %0 = vector.load %arg1[%c0, %c0_0] : memref<192x25xbf16, #tpu.memory_space<vmem>>, vector<192x25xbf16>
    %c0_1 = arith.constant 0 : index
    %c0_2 = arith.constant 0 : index
    %1 = vector.load %arg0[%c0_1, %c0_2] : memref<25x256xbf16, #tpu.memory_space<vmem>>, vector<25x256xbf16>
    %cst = arith.constant dense<0.000000e+00> : vector<192x256xf32>
    %2 = tpu.matmul %0, %1, %cst {dimension_numbers = #tpu.dot_dimension_numbers<[1], [0], [0], [1], [0, 0, 1, 1], [], []>} : vector<192x25xbf16>, vector<25x256xbf16>, vector<192x256xf32> -> vector<192x256xf32>
    %cst_3 = arith.constant 0.000000e+00 : f32
    %3 = vector.broadcast %cst_3 : f32 to vector<192x256xf32>
    %4 = arith.maximumf %2, %3 : vector<192x256xf32>
    %c0_4 = arith.constant 0 : index
    %c0_5 = arith.constant 0 : index
    %5 = vector.load %arg2[%c0_4, %c0_5] : memref<16x192xbf16, #tpu.memory_space<vmem>>, vector<16x192xbf16>
    %6 = arith.truncf %4 : vector<192x256xf32> to vector<192x256xbf16>
    %cst_6 = arith.constant dense<0.000000e+00> : vector<16x256xf32>
    %7 = tpu.matmul %5, %6, %cst_6 {dimension_numbers = #tpu.dot_dimension_numbers<[1], [0], [0], [1], [0, 0, 1, 1], [], []>} : vector<16x192xbf16>, vector<192x256xbf16>, vector<16x256xf32> -> vector<16x256xf32>
    %c0_7 = arith.constant 0 : index
    %c0_8 = arith.constant 0 : index
    %8 = vector.load %arg3[%c0_7, %c0_8] : memref<16x1xf32, #tpu.memory_space<vmem>>, vector<16x1xf32>
    %9 = vector.broadcast %8 : vector<16x1xf32> to vector<16x256xf32>
    %10 = arith.addf %7, %9 : vector<16x256xf32>
    %c0_9 = arith.constant 0 : index
    %c0_10 = arith.constant 0 : index
    %11 = vector.load %arg4[%c0_9, %c0_10] : memref<16x256xf32, #tpu.memory_space<vmem>>, vector<16x256xf32>
    tpu.vector_store %arg4[%c0_9, %c0_10], %10 {strides = array<i32>} : memref<16x256xf32, #tpu.memory_space<vmem>>, vector<16x256xf32>,
    return
  }
}

</mosaic_0001>

<llo_original>
// kernel: _forward_impl.1
$region0: #{_forward_impl.1}
  #allocation0 [shape = 'u32[]', space=smem, size = 0x4, offset = 0x4, fixed_abs, tag = 'smem constant byte address 0x4 - core index']
  #allocation1 [shape = 'u32[144,128]{1,0:T(1,128)}', space=vmem, size = 0x12000, scoped, tag = 'internal scratch']
  %s0 = inlined_call_operand.vmem [shape: bf16[25,256], index: 0, kind: input, shape index: {}]
  %s1 = inlined_call_operand.vmem [shape: bf16[192,25], index: 1, kind: input, shape index: {}]
  %s2 = inlined_call_operand.vmem [shape: bf16[16,192], index: 2, kind: input, shape index: {}]
  %s3 = inlined_call_operand.vmem [shape: f32[16,1], index: 3, kind: input, shape index: {}]
  %s4 = inlined_call_operand.vmem [shape: f32[16,256], index: 4, kind: output, shape index: {}]
  %s5 = sld [smem:[#allocation0]]
  $region26: #{_forward_impl.1} parent=0
    _
  %s7 = ssub.s32 1, %s5
  %s8 = scalar_select 0, %s7, %s5
  // Predicated region
  $region2: #{_forward_impl.1} parent=0 // pred_check
    _
  $region3: #{_forward_impl.1} parent=0 // pred_check_branch
    %10 = sbr.rel (0) target = $region5
  $region4: #{_forward_impl.1} parent=0 // pred_region
    _
  $region5: #{_forward_impl.1} parent=0 // pred_fallthru
    _
  // Predicated region
  $region6: #{_forward_impl.1} parent=0 // pred_check
    _
  $region7: #{_forward_impl.1} parent=0 // pred_check_branch
    %12 = sbr.rel (0) target = $region9
  $region8: #{_forward_impl.1} parent=0 // pred_region
    _
  $region9: #{_forward_impl.1} parent=0 // pred_fallthru
    _
  // Predicated region
  $region10: #{_forward_impl.1} parent=0 // pred_check
    _
  $region11: #{_forward_impl.1} parent=0 // pred_check_branch
    %14 = sbr.rel (0) target = $region13
  $region12: #{_forward_impl.1} parent=0 // pred_region
    _
  $region13: #{_forward_impl.1} parent=0 // pred_fallthru
    _
  // Predicated region
  $region14: #{_forward_impl.1} parent=0 // pred_check
    _
  $region15: #{_forward_impl.1} parent=0 // pred_check_branch
    %16 = sbr.rel (0) target = $region17
  $region16: #{_forward_impl.1} parent=0 // pred_region
    _
  $region17: #{_forward_impl.1} parent=0 // pred_fallthru
    _
  %v18 = vld [vmem:[%s1] sm:$0xf]
  %v19 = vld [vmem:[%s1 + $0x4] sm:$0xf]
  %v20 = vld [vmem:[%s1 + $0x8] sm:$0xf]
  %v21 = vld [vmem:[%s1 + $0xc] sm:$0xf]
  %v22 = vld [vmem:[%s1 + $0x10] sm:$0xf]
  %v23 = vld [vmem:[%s1 + $0x14] sm:$0xf]
  %v24 = vld [vmem:[%s1 + $0x18] sm:$0xf]
  %v25 = vld [vmem:[%s1 + $0x1c] sm:$0xf]
  %v26 = vld [vmem:[%s1 + $0x20] sm:$0xf]
  %v27 = vld [vmem:[%s1 + $0x24] sm:$0xf]
  %v28 = vld [vmem:[%s1 + $0x28] sm:$0xf]
  %v29 = vld [vmem:[%s1 + $0x2c] sm:$0xf]
  %v30 = vld [vmem:[%s1 + $0x30] sm:$0xf]
  %v31 = vld [vmem:[%s1 + $0x34] sm:$0xf]
  %v32 = vld [vmem:[%s1 + $0x38] sm:$0xf]
  %v33 = vld [vmem:[%s1 + $0x3c] sm:$0xf]
  %v34 = vld [vmem:[%s1 + $0x40] sm:$0xf]
  %v35 = vld [vmem:[%s1 + $0x44] sm:$0xf]
  %v36 = vld [vmem:[%s1 + $0x48] sm:$0xf]
  %v37 = vld [vmem:[%s1 + $0x4c] sm:$0xf]
  %v38 = vld [vmem:[%s1 + $0x50] sm:$0xf]
  %v39 = vld [vmem:[%s1 + $0x54] sm:$0xf]
  %v40 = vld [vmem:[%s1 + $0x58] sm:$0xf]
  %v41 = vld [vmem:[%s1 + $0x5c] sm:$0xf]
  %v42 = vld [vmem:[%s0] sm:$0xff]
  %v43 = vld [vmem:[%s0 + $0x8] sm:$0xff]
  %v44 = vld [vmem:[%s0 + $0x10] sm:$0xff]
  %v45 = vld [vmem:[%s0 + $0x18] sm:$0x11]
  %v70 = vunpack.c.l.b16 %v18
  %v71 = vunpack.c.l.b16 %v19
  %v72 = vunpack.c.l.b16 %v20
  %v73 = vunpack.c.l.b16 %v21
  %v74 = vunpack.c.l.b16 %v22
  %v75 = vunpack.c.l.b16 %v23
  %v76 = vunpack.c.l.b16 %v24
  %v77 = vunpack.c.l.b16 %v25
  %v78 = vunpack.c.l.b16 %v26
  %v79 = vunpack.c.l.b16 %v27
  %v80 = vunpack.c.l.b16 %v28
  %v81 = vunpack.c.l.b16 %v29
  %v82 = vunpack.c.l.b16 %v30
  %v83 = vunpack.c.l.b16 %v31
  %v84 = vunpack.c.l.b16 %v32
  %v85 = vunpack.c.l.b16 %v33
  %v86 = vunpack.c.l.b16 %v34
  %v87 = vunpack.c.l.b16 %v35
  %v88 = vunpack.c.l.b16 %v36
  %v89 = vunpack.c.l.b16 %v37
  %v90 = vunpack.c.l.b16 %v38
  %v91 = vunpack.c.l.b16 %v39
  %v92 = vunpack.c.l.b16 %v40
  %v93 = vunpack.c.l.b16 %v41
  %v94 = vpack.c.b16 %v71, %v70
  %v95 = vpack.c.b16 %v73, %v72
  %v96 = vpack.c.b16 %v75, %v74
  %v97 = vpack.c.b16 %v77, %v76
  %v98 = vpack.c.b16 %v79, %v78
  %v99 = vpack.c.b16 %v81, %v80
  %v100 = vpack.c.b16 %v83, %v82
  %v101 = vpack.c.b16 %v85, %v84
  %v102 = vpack.c.b16 %v87, %v86
  %v103 = vpack.c.b16 %v89, %v88
  %v104 = vpack.c.b16 %v91, %v90
  %v105 = vpack.c.b16 %v93, %v92
  %v110 = vunpack.c.l.b16 %v42
  %v111 = vunpack.c.h.b16 %v42
  %v112 = vunpack.c.l.b16 %v43
  %v113 = vunpack.c.h.b16 %v43
  %v114 = vunpack.c.l.b16 %v44
  %v115 = vunpack.c.h.b16 %v44
  %v116 = vunpack.c.l.b16 %v45
  %v117 = vunpack.c.h.b16 %v45
  %v118 = vpack.c.b16 %v112, %v110
  %v119 = vpack.c.b16 %v113, %v111
  %v120 = vpack.c.b16 %v116, %v114
  %v121 = vpack.c.b16 %v117, %v115
  %vm124 = vcmask 203776
  %v126 = vsel %vm124, %v94, 0
  %v129 = vsel %vm124, %v95, 0
  %v132 = vsel %vm124, %v96, 0
  %v135 = vsel %vm124, %v97, 0
  %v138 = vsel %vm124, %v98, 0
  %v141 = vsel %vm124, %v99, 0
  %v144 = vsel %vm124, %v100, 0
  %v147 = vsel %vm124, %v101, 0
  %v150 = vsel %vm124, %v102, 0
  %v153 = vsel %vm124, %v103, 0
  %v156 = vsel %vm124, %v104, 0
  %v159 = vsel %vm124, %v105, 0
  %vm161 = vcmask 1043456
  %vm162 = vcmask 1044480
  %v163 = vsel %vm161, 4294967295, 65535
  %v164 = vsel %vm162, %v163, 0
  %v166 = vand.u32 %v120, %v164
  %v169 = vand.u32 %v121, %v164
  %171 = vmatprep.subr.bf16.mxu0 %v119
  %172 = vmatpush1.bf16.msra.mxu0 %v118
  %173 = vmatprep.subr.bf16.mxu0 %v169
  %174 = vmatpush1.bf16.msra.mxu0 %v166
  %175 = vmatprep.subr.bf16.mxu0 0
  %176 = vmatpush1.bf16.msra.mxu0 0
  %177 = vmatprep.subr.bf16.mxu0 0
  %178 = vmatpush1.bf16.msra.mxu0 0
  %179 = vmatprep.subr.bf16.mxu0 0
  %180 = vmatpush1.bf16.msra.mxu0 0
  %181 = vmatprep.subr.bf16.mxu0 0
  %182 = vmatpush1.bf16.msra.mxu0 0
  %183 = vmatprep.subr.bf16.mxu0 0
  %184 = vmatpush1.bf16.msra.mxu0 0
  %185 = vmatprep.subr.bf16.mxu0 0
  %186 = vmatpush1.bf16.msra.mxu0 0
  %187 = vmatprep.subr.bf16.mxu0 0
  %188 = vmatpush1.bf16.msra.mxu0 0
  %189 = vmatprep.subr.bf16.mxu0 0
  %190 = vmatpush1.bf16.msra.mxu0 0
  %191 = vmatprep.subr.bf16.mxu0 0
  %192 = vmatpush1.bf16.msra.mxu0 0
  %193 = vmatprep.subr.bf16.mxu0 0
  %194 = vmatpush1.bf16.msra.mxu0 0
  %195 = vmatprep.subr.bf16.mxu0 0
  %196 = vmatpush1.bf16.msra.mxu0 0
  %197 = vmatprep.subr.bf16.mxu0 0
  %198 = vmatpush1.bf16.msra.mxu0 0
  %199 = vmatprep.subr.bf16.mxu0 0
  %200 = vmatpush1.bf16.msra.mxu0 0
  %201 = vmatprep.subr.bf16.mxu0 0
  %202 = vmatpush1.bf16.msra.mxu0 0
  %203 = vmatprep.mubr.bf16.mxu0 0
  %204 = vmatmul.mubr.bf16.gmra.mrb[0].mxu0 %v126
  %v205 = vpop.f32.mrb[0].mxu0
  %v206 = vadd.f32 0.0, %v205
  %v207 = vpop.f32.mrb[0].mxu0
  %v208 = vadd.f32 0.0, %v207
  %v209 = vpop.f32.mrb[0].mxu0
  %v210 = vadd.f32 0.0, %v209
  %v211 = vpop.f32.mrb[0].mxu0
  %v212 = vadd.f32 0.0, %v211
  %213 = vmatprep.mubr.bf16.mxu0 0
  %214 = vmatmul.mubr.bf16.gmra.mrb[0].mxu0 %v129
  %v215 = vpop.f32.mrb[0].mxu0
  %v216 = vadd.f32 0.0, %v215
  %v217 = vpop.f32.mrb[0].mxu0
  %v218 = vadd.f32 0.0, %v217
  %v219 = vpop.f32.mrb[0].mxu0
  %v220 = vadd.f32 0.0, %v219
  %v221 = vpop.f32.mrb[0].mxu0
  %v222 = vadd.f32 0.0, %v221
  %223 = vmatprep.mubr.bf16.mxu0 0
  %224 = vmatmul.mubr.bf16.gmra.mrb[0].mxu0 %v132
  %v225 = vpop.f32.mrb[0].mxu0
  %v226 = vadd.f32 0.0, %v225
  %v227 = vpop.f32.mrb[0].mxu0
  %v228 = vadd.f32 0.0, %v227
  %v229 = vpop.f32.mrb[0].mxu0
  %v230 = vadd.f32 0.0, %v229
  %v231 = vpop.f32.mrb[0].mxu0
  %v232 = vadd.f32 0.0, %v231
  %233 = vmatprep.mubr.bf16.mxu0 0
  %234 = vmatmul.mubr.bf16.gmra.mrb[0].mxu0 %v135
  %v235 = vpop.f32.mrb[0].mxu0
  %v236 = vadd.f32 0.0, %v235
  %v237 = vpop.f32.mrb[0].mxu0
  %v238 = vadd.f32 0.0, %v237
  %v239 = vpop.f32.mrb[0].mxu0
  %v240 = vadd.f32 0.0, %v239
  %v241 = vpop.f32.mrb[0].mxu0
  %v242 = vadd.f32 0.0, %v241
  %243 = vmatprep.mubr.bf16.mxu0 0
  %244 = vmatmul.mubr.bf16.gmra.mrb[0].mxu0 %v138
  %v245 = vpop.f32.mrb[0].mxu0
  %v246 = vadd.f32 0.0, %v245
  %v247 = vpop.f32.mrb[0].mxu0
  %v248 = vadd.f32 0.0, %v247
  %v249 = vpop.f32.mrb[0].mxu0
  %v250 = vadd.f32 0.0, %v249
  %v251 = vpop.f32.mrb[0].mxu0
  %v252 = vadd.f32 0.0, %v251
  %253 = vmatprep.mubr.bf16.mxu0 0
  %254 = vmatmul.mubr.bf16.gmra.mrb[0].mxu0 %v141
  %v255 = vpop.f32.mrb[0].mxu0
  %v256 = vadd.f32 0.0, %v255
  %v257 = vpop.f32.mrb[0].mxu0
  %v258 = vadd.f32 0.0, %v257
  %v259 = vpop.f32.mrb[0].mxu0
  %v260 = vadd.f32 0.0, %v259
  %v261 = vpop.f32.mrb[0].mxu0
  %v262 = vadd.f32 0.0, %v261
  %263 = vmatprep.mubr.bf16.mxu0 0
  %264 = vmatmul.mubr.bf16.gmra.mrb[0].mxu0 %v144
  %v265 = vpop.f32.mrb[0].mxu0
  %v266 = vadd.f32 0.0, %v265
  %v267 = vpop.f32.mrb[0].mxu0
  %v268 = vadd.f32 0.0, %v267
  %v269 = vpop.f32.mrb[0].mxu0
  %v270 = vadd.f32 0.0, %v269
  %v271 = vpop.f32.mrb[0].mxu0
  %v272 = vadd.f32 0.0, %v271
  %273 = vmatprep.mubr.bf16.mxu0 0
  %274 = vmatmul.mubr.bf16.gmra.mrb[0].mxu0 %v147
  %v275 = vpop.f32.mrb[0].mxu0
  %v276 = vadd.f32 0.0, %v275
  %v277 = vpop.f32.mrb[0].mxu0
  %v278 = vadd.f32 0.0, %v277
  %v279 = vpop.f32.mrb[0].mxu0
  %v280 = vadd.f32 0.0, %v279
  %v281 = vpop.f32.mrb[0].mxu0
  %v282 = vadd.f32 0.0, %v281
  %283 = vmatprep.mubr.bf16.mxu0 0
  %284 = vmatmul.mubr.bf16.gmra.mrb[0].mxu0 %v150
  %v285 = vpop.f32.mrb[0].mxu0
  %v286 = vadd.f32 0.0, %v285
  %v287 = vpop.f32.mrb[0].mxu0
  %v288 = vadd.f32 0.0, %v287
  %v289 = vpop.f32.mrb[0].mxu0
  %v290 = vadd.f32 0.0, %v289
  %v291 = vpop.f32.mrb[0].mxu0
  %v292 = vadd.f32 0.0, %v291
  %293 = vmatprep.mubr.bf16.mxu0 0
  %294 = vmatmul.mubr.bf16.gmra.mrb[0].mxu0 %v153
  %v295 = vpop.f32.mrb[0].mxu0
  %v296 = vadd.f32 0.0, %v295
  %v297 = vpop.f32.mrb[0].mxu0
  %v298 = vadd.f32 0.0, %v297
  %v299 = vpop.f32.mrb[0].mxu0
  %v300 = vadd.f32 0.0, %v299
  %v301 = vpop.f32.mrb[0].mxu0
  %v302 = vadd.f32 0.0, %v301
  %303 = vmatprep.mubr.bf16.mxu0 0
  %304 = vmatmul.mubr.bf16.gmra.mrb[0].mxu0 %v156
  %v305 = vpop.f32.mrb[0].mxu0
  %v306 = vadd.f32 0.0, %v305
  %v307 = vpop.f32.mrb[0].mxu0
  %v308 = vadd.f32 0.0, %v307
  %v309 = vpop.f32.mrb[0].mxu0
  %v310 = vadd.f32 0.0, %v309
  %v311 = vpop.f32.mrb[0].mxu0
  %v312 = vadd.f32 0.0, %v311
  %313 = vmatprep.mubr.bf16.mxu0 0
  %314 = vmatmul.mubr.bf16.gmra.mrb[0].mxu0 %v159
  %v315 = vpop.f32.mrb[0].mxu0
  %v316 = vadd.f32 0.0, %v315
  %v317 = vpop.f32.mrb[0].mxu0
  %v318 = vadd.f32 0.0, %v317
  %v319 = vpop.f32.mrb[0].mxu0
  %v320 = vadd.f32 0.0, %v319
  %v321 = vpop.f32.mrb[0].mxu0
  %v322 = vadd.f32 0.0, %v321
  %323 = vdwg.mxu0
  %v324 = vmax.f32 %v206, 0.0
  %v325 = vmax.f32 %v208, 0.0
  %v326 = vmax.f32 %v210, 0.0
  %v327 = vmax.f32 %v212, 0.0
  %v328 = vmax.f32 %v216, 0.0
  %v329 = vmax.f32 %v218, 0.0
  %v330 = vmax.f32 %v220, 0.0
  %v331 = vmax.f32 %v222, 0.0
  %v332 = vmax.f32 %v226, 0.0
  %v333 = vmax.f32 %v228, 0.0
  %v334 = vmax.f32 %v230, 0.0
  %v335 = vmax.f32 %v232, 0.0
  %v336 = vmax.f32 %v236, 0.0
  %v337 = vmax.f32 %v238, 0.0
  %v338 = vmax.f32 %v240, 0.0
  %v339 = vmax.f32 %v242, 0.0
  %v340 = vmax.f32 %v246, 0.0
  %v341 = vmax.f32 %v248, 0.0
  %v342 = vmax.f32 %v250, 0.0
  %v343 = vmax.f32 %v252, 0.0
  %v344 = vmax.f32 %v256, 0.0
  %v345 = vmax.f32 %v258, 0.0
  %v346 = vmax.f32 %v260, 0.0
  %v347 = vmax.f32 %v262, 0.0
  %v348 = vmax.f32 %v266, 0.0
  %v349 = vmax.f32 %v268, 0.0
  %v350 = vmax.f32 %v270, 0.0
  %v351 = vmax.f32 %v272, 0.0
  %v352 = vmax.f32 %v276, 0.0
  %v353 = vmax.f32 %v278, 0.0
  %v354 = vmax.f32 %v280, 0.0
  %v355 = vmax.f32 %v282, 0.0
  %v356 = vmax.f32 %v286, 0.0
  %v357 = vmax.f32 %v288, 0.0
  %v358 = vmax.f32 %v290, 0.0
  %v359 = vmax.f32 %v292, 0.0
  %v360 = vmax.f32 %v296, 0.0
  %v361 = vmax.f32 %v298, 0.0
  %v362 = vmax.f32 %v300, 0.0
  %v363 = vmax.f32 %v302, 0.0
  %v364 = vmax.f32 %v306, 0.0
  %v365 = vmax.f32 %v308, 0.0
  %v366 = vmax.f32 %v310, 0.0
  %v367 = vmax.f32 %v312, 0.0
  %v368 = vmax.f32 %v316, 0.0
  %v369 = vmax.f32 %v318, 0.0
  %v370 = vmax.f32 %v320, 0.0
  %v371 = vmax.f32 %v322, 0.0
  %v372 = vld [vmem:[%s2] sm:$0xff]
  %v373 = vld [vmem:[%s2 + $0x8] sm:$0xff]
  %v374 = vpack.c.bf16 %v326, %v324
  %v375 = vpack.c.bf16 %v327, %v325
  %v376 = vpack.c.bf16 %v330, %v328
  %v377 = vpack.c.bf16 %v331, %v329
  %v378 = vpack.c.bf16 %v334, %v332
  %v379 = vpack.c.bf16 %v335, %v333
  %v380 = vpack.c.bf16 %v338, %v336
  %v381 = vpack.c.bf16 %v339, %v337
  %v382 = vpack.c.bf16 %v342, %v340
  %v383 = vpack.c.bf16 %v343, %v341
  %v384 = vpack.c.bf16 %v346, %v344
  %v385 = vpack.c.bf16 %v347, %v345
  %v386 = vpack.c.bf16 %v350, %v348
  %v387 = vpack.c.bf16 %v351, %v349
  %v388 = vpack.c.bf16 %v354, %v352
  %v389 = vpack.c.bf16 %v355, %v353
  %v390 = vpack.c.bf16 %v358, %v356
  %v391 = vpack.c.bf16 %v359, %v357
  %v392 = vpack.c.bf16 %v362, %v360
  %v393 = vpack.c.bf16 %v363, %v361
  %v394 = vpack.c.bf16 %v366, %v364
  %v395 = vpack.c.bf16 %v367, %v365
  %v396 = vpack.c.bf16 %v370, %v368
  %v397 = vpack.c.bf16 %v371, %v369
  %v398 = vld [vmem:[%s3] sm:$0xff]
  %v399 = vld [vmem:[%s3 + $0x8] sm:$0xff]
  %401 = vset.pattern.permute.xlu0 0
  %402 = vperm.xlu0 %401, %v398
  %v403 = vpop.permute.xlu0 %402
  %406 = vset.pattern.permute.xlu0 0
  %407 = vperm.xlu0 %406, %v399
  %v408 = vpop.permute.xlu0 %407
  %v412 = vunpack.c.l.b16 %v372
  %v413 = vunpack.c.h.b16 %v372
  %v414 = vunpack.c.l.b16 %v373
  %v415 = vunpack.c.h.b16 %v373
  %v416 = vpack.c.b16 %v414, %v412
  %v417 = vpack.c.b16 %v415, %v413
  %vm419 = vcmask 523264
  %v421 = vsel %vm419, %v417, 0
  %423 = vmatprep.subr.bf16.mxu0 %v375
  %424 = vmatpush1.bf16.msra.mxu0 %v374
  %425 = vmatprep.subr.bf16.mxu0 %v377
  %426 = vmatpush1.bf16.msra.mxu0 %v376
  %427 = vmatprep.subr.bf16.mxu0 %v379
  %428 = vmatpush1.bf16.msra.mxu0 %v378
  %429 = vmatprep.subr.bf16.mxu0 %v381
  %430 = vmatpush1.bf16.msra.mxu0 %v380
  %431 = vmatprep.subr.bf16.mxu0 %v383
  %432 = vmatpush1.bf16.msra.mxu0 %v382
  %433 = vmatprep.subr.bf16.mxu0 %v385
  %434 = vmatpush1.bf16.msra.mxu0 %v384
  %435 = vmatprep.subr.bf16.mxu0 %v387
  %436 = vmatpush1.bf16.msra.mxu0 %v386
  %437 = vmatprep.subr.bf16.mxu0 %v389
  %438 = vmatpush1.bf16.msra.mxu0 %v388
  %439 = vmatprep.subr.bf16.mxu0 %v391
  %440 = vmatpush1.bf16.msra.mxu0 %v390
  %441 = vmatprep.subr.bf16.mxu0 %v393
  %442 = vmatpush1.bf16.msra.mxu0 %v392
  %443 = vmatprep.subr.bf16.mxu0 %v395
  %444 = vmatpush1.bf16.msra.mxu0 %v394
  %445 = vmatprep.subr.bf16.mxu0 %v397
  %446 = vmatpush1.bf16.msra.mxu0 %v396
  %447 = vmatprep.subr.bf16.mxu0 0
  %448 = vmatpush1.bf16.msra.mxu0 0
  %449 = vmatprep.subr.bf16.mxu0 0
  %450 = vmatpush1.bf16.msra.mxu0 0
  %451 = vmatprep.subr.bf16.mxu0 0
  %452 = vmatpush1.bf16.msra.mxu0 0
  %453 = vmatprep.subr.bf16.mxu0 0
  %454 = vmatpush1.bf16.msra.mxu0 0
  %455 = vmatprep.mubr.bf16.mxu0 %v421
  %456 = vmatmul.mubr.bf16.gmra.mrb[0].mxu0 %v416
  %v457 = vpop.f32.mrb[0].mxu0
  %v458 = vadd.f32 %v403, %v457
  %v459 = vpop.f32.mrb[0].mxu0
  %v460 = vadd.f32 %v403, %v459
  %v461 = vpop.f32.mrb[0].mxu0
  %v462 = vadd.f32 %v408, %v461
  %v463 = vpop.f32.mrb[0].mxu0
  %v464 = vadd.f32 %v408, %v463
  %465 = vdwg.mxu0
  %466 = vst [vmem:[%s4] sm:$0xff] %v458
  %467 = vst [vmem:[%s4 + $0x8] sm:$0xff] %v460
  %468 = vst [vmem:[%s4 + $0x10] sm:$0xff] %v462
  %469 = vst [vmem:[%s4 + $0x18] sm:$0xff] %v464
  // Predicated region
  $region18: #{_forward_impl.1} parent=0 // pred_check
    _
  $region19: #{_forward_impl.1} parent=0 // pred_check_branch
    %471 = sbr.rel (0) target = $region21
  $region20: #{_forward_impl.1} parent=0 // pred_region
    _
  $region21: #{_forward_impl.1} parent=0 // pred_fallthru
    _
  // Predicated region
  $region22: #{_forward_impl.1} parent=0 // pred_check
    _
  $region23: #{_forward_impl.1} parent=0 // pred_check_branch
    %473 = sbr.rel (0) target = $region25
  $region24: #{_forward_impl.1} parent=0 // pred_region
    _
  $region25: #{_forward_impl.1} parent=0 // pred_fallthru
    _

</llo_original>
